<compile_context>
chip_gen: v5e
topology: v5e:2x2
jax: 0.10.0
libtpu: 0.0.40
codegen_flags: <defaults>
</compile_context>

<pallas_src>
import functools

import jax
import jax.numpy as jnp
from jax.experimental import pallas as pl
from jax.experimental.pallas import tpu as pltpu


def _round_up(x, m):
    return (x + m - 1) // m * m


# ---------------------------------------------------------------------------
# Pallas kernel: weight-stationary block-complex matmul with fused bias.
#   acc[2Co, tm] += BT[2Co, tk] @ AT[tk, tm]   (grid axis 1 = K, "arbitrary")
#   on last K step: out = acc + bias
# ---------------------------------------------------------------------------
def _cconv_matmul_kernel(bt_ref, bias_ref, at_ref, out_ref, acc_ref):
    @pl.when(pl.program_id(1) == 0)
    def _init():
        acc_ref[...] = jnp.zeros_like(acc_ref)

    acc_ref[...] += jnp.dot(bt_ref[...], at_ref[...],
                            preferred_element_type=jnp.float32)

    @pl.when(pl.program_id(1) == pl.num_programs(1) - 1)
    def _finalize():
        out_ref[...] = acc_ref[...] + bias_ref[...]


def _complex_matmul_pallas(bt, bias_row, at, *, tm=512, tk_max=2048):
    """out[2Co, M] = BT[2Co, 2K] @ AT[2K, M] + bias  (all float32)."""
    F, K2 = bt.shape           # F = 2*Cout, K2 = 2*K
    _, M = at.shape

    # M tile: large (mem-bound roofline), but keep >=2 grid steps when the
    # problem allows so both v7x TensorCores get work.
    tm_eff = tm
    while tm_eff > 128 and pl.cdiv(M, tm_eff) < 2:
        tm_eff //= 2
    tm_eff = max(tm_eff, 128)

    # K tile: keep the whole contraction resident when small; otherwise tile
    # it and accumulate in VMEM so per-step footprint stays bounded.
    if K2 <= tk_max:
        K2p = _round_up(K2, 8)
        tk = K2p
    else:
        K2p = _round_up(K2, tk_max)
        tk = tk_max

    Fp = _round_up(F, 8)
    Mp = _round_up(M, tm_eff)

    bt_p = jnp.zeros((Fp, K2p), jnp.float32).at[:F, :K2].set(bt)
    bias_p = jnp.zeros((Fp, 1), jnp.float32).at[:F, 0].set(bias_row)
    at_p = jnp.pad(at, ((0, K2p - K2), (0, Mp - M)))

    out = pl.pallas_call(
        _cconv_matmul_kernel,
        out_shape=jax.ShapeDtypeStruct((Fp, Mp), jnp.float32),
        grid_spec=pltpu.PrefetchScalarGridSpec(
            num_scalar_prefetch=0,
            grid=(Mp // tm_eff, K2p // tk),
            in_specs=[
                pl.BlockSpec((Fp, tk), lambda i, k: (0, k)),     # BT
                pl.BlockSpec((Fp, 1), lambda i, k: (0, 0)),      # bias
                pl.BlockSpec((tk, tm_eff), lambda i, k: (k, i)),  # AT
            ],
            out_specs=pl.BlockSpec((Fp, tm_eff), lambda i, k: (0, i)),
            scratch_shapes=[pltpu.VMEM((Fp, tm_eff), jnp.float32)],
        ),
        compiler_params=pltpu.CompilerParams(
            dimension_semantics=("parallel", "arbitrary")),
    )(bt_p, bias_p, at_p)
    return out[:F, :M]


# ---------------------------------------------------------------------------
# Complex Conv3d forward (matches nn.Conv3d(..., dtype=torch.cfloat))
# ---------------------------------------------------------------------------
def complex_conv3d(x, weight, bias=None, stride=1, padding=0, dilation=1,
                   groups=1, padding_mode="zeros", tm=512):
    assert groups == 1              # TODO(synk): groups > 1 not implemented
    assert padding_mode == "zeros"  # TODO(synk): only zero-padding supported

    n, c_in, _, _, _ = x.shape
    c_out, c_in_w, kD, kH, kW = weight.shape
    assert c_in_w == c_in
    s, p, dl = stride, padding, dilation

    # Split planes, concat real|imag channels, and move (channels, taps) to
    # the front while the tensor is still small -> the patch tensor is built
    # directly in the [2K, M] layout the kernel wants (no big transpose).
    xr = jnp.real(x).astype(jnp.float32)
    xi = jnp.imag(x).astype(jnp.float32)
    xc = jnp.concatenate([xr, xi], axis=1)                  # [N, 2C, D, H, W]
    xc = jnp.transpose(xc, (1, 0, 2, 3, 4))                 # [2C, N, D, H, W]
    xc = jnp.pad(xc, ((0, 0), (0, 0), (p, p), (p, p), (p, p)))
    Dp_, Hp_, Wp_ = xc.shape[2:]
    Do = (Dp_ - dl * (kD - 1) - 1) // s + 1
    Ho = (Hp_ - dl * (kH - 1) - 1) // s + 1
    Wo = (Wp_ - dl * (kW - 1) - 1) // s + 1

    cols = []
    for kd in range(kD):
        for kh in range(kH):
            for kw in range(kW):
                cols.append(
                    xc[:, :,
                       kd * dl: kd * dl + s * (Do - 1) + 1: s,
                       kh * dl: kh * dl + s * (Ho - 1) + 1: s,
                       kw * dl: kw * dl + s * (Wo - 1) + 1: s])
    k_tot = kD * kH * kW
    K = c_in * k_tot
    M = n * Do * Ho * Wo
    # [2C, kTot, N, Do, Ho, Wo] -> [2K, M]; row = plane*K + ci*kTot + tap
    at = jnp.stack(cols, axis=1).reshape(2 * K, M)

    wr = jnp.real(weight).astype(jnp.float32).reshape(c_out, K)
    wi = jnp.imag(weight).astype(jnp.float32).reshape(c_out, K)
    bt = jnp.concatenate(
        [jnp.concatenate([wr, -wi], axis=1),
         jnp.concatenate([wi, wr], axis=1)], axis=0)        # [2Cout, 2K]

    if bias is not None:
        bias_row = jnp.concatenate(
            [jnp.real(bias), jnp.imag(bias)]).astype(jnp.float32)
    else:
        bias_row = jnp.zeros((2 * c_out,), jnp.float32)

    out = _complex_matmul_pallas(bt, bias_row, at, tm=tm)   # [2Cout, M]
    out_c = jax.lax.complex(out[:c_out], out[c_out:])       # [Cout, M] c64
    out_c = out_c.reshape(c_out, n, Do, Ho, Wo)
    return jnp.transpose(out_c, (1, 0, 2, 3, 4))            # NC'D'H'W'


# ---------------------------------------------------------------------------
# Reference (plain JAX, for sanity check)
# ---------------------------------------------------------------------------
def _ref_complex_conv3d(x, weight, stride, padding, dilation):
    conv = functools.partial(
        jax.lax.conv_general_dilated,
        window_strides=(stride,) * 3,
        padding=[(padding, padding)] * 3,
        rhs_dilation=(dilation,) * 3,
        dimension_numbers=("NCDHW", "OIDHW", "NCDHW"),
    )
    xr = jnp.real(x).astype(jnp.float32)
    xi = jnp.imag(x).astype(jnp.float32)
    wr = jnp.real(weight).astype(jnp.float32)
    wi = jnp.imag(weight).astype(jnp.float32)
    rr = conv(xr, wr)
    ii = conv(xi, wi)
    ri = conv(xr, wi)
    ir = conv(xi, wr)
    return jax.lax.complex(rr - ii, ri + ir)


if __name__ == "__main__":
    # Conv3d(in_channels=4, out_channels=8, kernel_size=3), defaults:
    # stride=1, padding=0, dilation=1, groups=1, bias=False.
    N, C_in, C_out, KS = 2, 4, 8, 3
    D = H = W = 8
    stride, padding, dilation = 1, 0, 1

    key = jax.random.PRNGKey(0)
    k_xr, k_xi, k_wr, k_wi, k_br, k_bi = jax.random.split(key, 6)

    x = jax.lax.complex(
        jax.random.normal(k_xr, (N, C_in, D, H, W), jnp.float32),
        jax.random.normal(k_xi, (N, C_in, D, H, W), jnp.float32),
    )
    weight = jax.lax.complex(
        jax.random.normal(k_wr, (C_out, C_in, KS, KS, KS), jnp.float32) * 0.1,
        jax.random.normal(k_wi, (C_out, C_in, KS, KS, KS), jnp.float32) * 0.1,
    )

    out = complex_conv3d(x, weight, bias=None, stride=stride,
                         padding=padding, dilation=dilation)
    out = jax.block_until_ready(out)

    ref = _ref_complex_conv3d(x, weight, stride, padding, dilation)
    assert out.shape == (N, C_out, D - KS + 1, H - KS + 1, W - KS + 1)
    assert out.dtype == jnp.complex64
    assert jnp.allclose(out, ref, rtol=1e-3, atol=1e-3)

    # Exercise the fused-bias epilogue as well (module supports bias=True).
    bias = jax.lax.complex(
        jax.random.normal(k_br, (C_out,), jnp.float32),
        jax.random.normal(k_bi, (C_out,), jnp.float32),
    )
    out_b = jax.block_until_ready(
        complex_conv3d(x, weight, bias=bias, stride=stride,
                       padding=padding, dilation=dilation))
    ref_b = ref + bias[None, :, None, None, None]
    assert jnp.allclose(out_b, ref_b, rtol=1e-3, atol=1e-3)

    print("KERNEL_OK")
</pallas_src>

<mosaic_0001>
module attributes {stable_mosaic.version = 11 : i64} {
  func.func @_cconv_matmul_kernel(%arg0: i32, %arg1: i32, %arg2: memref<16x216xf32, #tpu.memory_space<vmem>>, %arg3: memref<16x1xf32, #tpu.memory_space<vmem>>, %arg4: memref<216x256xf32, #tpu.memory_space<vmem>>, %arg5: memref<16x256xf32, #tpu.memory_space<vmem>>, %arg6: memref<16x256xf32, #tpu.memory_space<vmem>>) attributes {dimension_semantics = [#tpu.dimension_semantics<parallel>, #tpu.dimension_semantics<arbitrary>], iteration_bounds = array<i64: 2, 1>, scalar_prefetch = 0 : i64, scratch_operands = 1 : i64, tpu.core_type = #tpu.core_type<tc>, window_params = [{transform_indices = @transform_0, window_bounds = array<i64: 16, 216>}, {pipeline_mode = #tpu.pipeline_mode<synchronous>, transform_indices = @transform_1, window_bounds = array<i64: 16, 1>}, {transform_indices = @transform_2, window_bounds = array<i64: 216, 256>}, {transform_indices = @transform_3, window_bounds = array<i64: 16, 256>}]} {
    %c0_i32 = arith.constant 0 : i32
    %0 = arith.cmpi eq, %arg1, %c0_i32 : i32
    %1 = arith.extui %0 : i1 to i32
    %c0_i32_0 = arith.constant 0 : i32
    %2 = arith.cmpi ne, %1, %c0_i32_0 : i32
    scf.if %2 {
      %cst_10 = arith.constant 0.000000e+00 : f32
      %12 = vector.broadcast %cst_10 : f32 to vector<16x256xf32>
      %c0_11 = arith.constant 0 : index
      %c0_12 = arith.constant 0 : index
      %13 = vector.load %arg6[%c0_11, %c0_12] : memref<16x256xf32, #tpu.memory_space<vmem>>, vector<16x256xf32>
      tpu.vector_store %arg6[%c0_11, %c0_12], %12 {strides = array<i32>} : memref<16x256xf32, #tpu.memory_space<vmem>>, vector<16x256xf32>,
    } else {
    }
    %c0 = arith.constant 0 : index
    %c0_1 = arith.constant 0 : index
    %3 = vector.load %arg6[%c0, %c0_1] : memref<16x256xf32, #tpu.memory_space<vmem>>, vector<16x256xf32>
    %c0_2 = arith.constant 0 : index
    %c0_3 = arith.constant 0 : index
    %4 = vector.load %arg2[%c0_2, %c0_3] : memref<16x216xf32, #tpu.memory_space<vmem>>, vector<16x216xf32>
    %c0_4 = arith.constant 0 : index
    %c0_5 = arith.constant 0 : index
    %5 = vector.load %arg4[%c0_4, %c0_5] : memref<216x256xf32, #tpu.memory_space<vmem>>, vector<216x256xf32>
    %cst = arith.constant dense<0.000000e+00> : vector<16x256xf32>
    %6 = tpu.matmul %4, %5, %cst {dimension_numbers = #tpu.dot_dimension_numbers<[1], [0], [0], [1], [0, 0, 1, 1], [], []>} : vector<16x216xf32>, vector<216x256xf32>, vector<16x256xf32> -> vector<16x256xf32>
    %7 = arith.addf %3, %6 : vector<16x256xf32>
    %c0_6 = arith.constant 0 : index
    %c0_7 = arith.constant 0 : index
    %8 = vector.load %arg6[%c0_6, %c0_7] : memref<16x256xf32, #tpu.memory_space<vmem>>, vector<16x256xf32>
    tpu.vector_store %arg6[%c0_6, %c0_7], %7 {strides = array<i32>} : memref<16x256xf32, #tpu.memory_space<vmem>>, vector<16x256xf32>,
    %c0_i32_8 = arith.constant 0 : i32
    %9 = arith.cmpi eq, %arg1, %c0_i32_8 : i32
    %10 = arith.extui %9 : i1 to i32
    %c0_i32_9 = arith.constant 0 : i32
    %11 = arith.cmpi ne, %10, %c0_i32_9 : i32
    scf.if %11 {
      %c0_10 = arith.constant 0 : index
      %c0_11 = arith.constant 0 : index
      %12 = vector.load %arg6[%c0_10, %c0_11] : memref<16x256xf32, #tpu.memory_space<vmem>>, vector<16x256xf32>
      %c0_12 = arith.constant 0 : index
      %c0_13 = arith.constant 0 : index
      %13 = vector.load %arg3[%c0_12, %c0_13] : memref<16x1xf32, #tpu.memory_space<vmem>>, vector<16x1xf32>
      %14 = vector.broadcast %13 : vector<16x1xf32> to vector<16x256xf32>
      %15 = arith.addf %12, %14 : vector<16x256xf32>
      %c0_14 = arith.constant 0 : index
      %c0_15 = arith.constant 0 : index
      %16 = vector.load %arg5[%c0_14, %c0_15] : memref<16x256xf32, #tpu.memory_space<vmem>>, vector<16x256xf32>
      tpu.vector_store %arg5[%c0_14, %c0_15], %15 {strides = array<i32>} : memref<16x256xf32, #tpu.memory_space<vmem>>, vector<16x256xf32>,
    } else {
    }
    return
  }
  func.func @transform_0(%arg0: i32, %arg1: i32) -> (i32, i32) {
    %c0_i32 = arith.constant 0 : i32
    %c0_i32_0 = arith.constant 0 : i32
    return %c0_i32, %arg1 : i32, i32
  }
  func.func @transform_1(%arg0: i32, %arg1: i32) -> (i32, i32) {
    %c0_i32 = arith.constant 0 : i32
    %c0_i32_0 = arith.constant 0 : i32
    %c0_i32_1 = arith.constant 0 : i32
    return %c0_i32, %c0_i32_0 : i32, i32
  }
  func.func @transform_2(%arg0: i32, %arg1: i32) -> (i32, i32) {
    %c0_i32 = arith.constant 0 : i32
    return %arg1, %arg0 : i32, i32
  }
  func.func @transform_3(%arg0: i32, %arg1: i32) -> (i32, i32) {
    %c0_i32 = arith.constant 0 : i32
    %c0_i32_0 = arith.constant 0 : i32
    return %c0_i32, %arg0 : i32, i32
  }
}

</mosaic_0001>

<llo_original>
// kernel: tpu_custom_call.1
$region0: #{tpu_custom_call.1}
  #allocation0 [shape = 'u32[]', space=smem, size = 0x4, offset = 0x4, fixed_abs, tag = 'smem constant byte address 0x4 - core index']
  #allocation1 [shape = 'u32[72,128]{1,0:T(1,128)}', space=vmem, size = 0x9000, scoped, tag = 'internal scratch']
  #allocation2 [shape = 'f32[16,256]{1,0:T(8,128)}', space=vmem, size = 0x4000, scoped, tag = 'scratch operand']
  %s0 = inlined_call_operand.hbm [shape: f32[16,216], index: 0, kind: input, shape index: {}]
  %s1 = inlined_call_operand.vmem [shape: f32[16,1], index: 1, kind: input, shape index: {}]
  %s2 = inlined_call_operand.hbm [shape: f32[216,512], index: 2, kind: input, shape index: {}]
  %s3 = inlined_call_operand.hbm [shape: f32[16,512], index: 3, kind: output, shape index: {}]
  %s4 = sld [smem:[#allocation0]]
  $region61: #{tpu_custom_call.1} parent=0
    _
  %s6 = ssub.s32 1, %s4
  %s7 = scalar_select 0, %s6, %s4
  $region1: #{tpu_custom_call.1} parent=0
    #allocation3 [shape = 'u8[16384]{0}', space=vmem, size = 0x4000, scoped, tag = 'input window, operand 0, single buffered']
    #allocation4 [shape = 's32[2]{0}', space=sflag, size = 0x8, scoped, tag = 'scoped memory for tpu_custom_call.1']
    #allocation5 [shape = 's32[2]{0}', space=sflag, size = 0x8, scoped, tag = 'scoped memory for tpu_custom_call.1']
    #allocation6 [shape = 'u8[442368]{0}', space=vmem, size = 0x6c000, scoped, tag = 'input window, operand 2']
    #allocation7 [shape = 's32[2]{0}', space=sflag, size = 0x8, scoped, tag = 'scoped memory for tpu_custom_call.1']
    #allocation8 [shape = 'u8[32768]{0}', space=vmem, size = 0x8000, scoped, tag = 'output window, operand 0']
    %8 = vsyncpa [#allocation4], 0
    %9 = vsyncpa [#allocation7], 0
    %s10 = scalar_lea.sflag [#allocation7], 1
    %11 = vsyncpa %s10, 0
    %12 = vsyncpa [#allocation5], 0
    %s13 = scalar_lea.sflag [#allocation5], 1
    %14 = vsyncpa %s13, 0
    loop: start=0, step=1, limit=4
    $region2: #{tpu_custom_call.1} parent=1 // loop_pre_header
      _
    $region3: #{tpu_custom_call.1} parent=1 // loop_header
      %s16 = sphi 0, %s20
      %p17 = scmp.ge.s32.totalorder %s16, 4
      %s23 = sphi 0, %s35
      %s24 = sphi 0, %s31
      %s25 = sphi 0, %s23
      %s26 = sphi 0, %s24
      %s27 = sphi 0, %s25
      %s28 = sphi 0, %s26
      %s38 = sphi 0, %s40
      %s41 = sphi 0, %s38
      %s42 = sphi 0, %s41
      %s58 = sphi 0, %s42
      %s62 = sphi 0, %s62
      %s64 = sphi 0, %s62
      %s65 = sphi 0, %s64
      %s79 = sphi 0, %s65
      %s87 = sphi 0, %s89
      %s90 = sphi 0, %s87
      %s91 = sphi 0, %s90
      %s107 = sphi 0, %s91
      %s113 = sphi 0, %s115
      %s116 = sphi 0, %s113
      %s117 = sphi 0, %s116
      %s133 = sphi 0, %s117
    $region4: #{tpu_custom_call.1} parent=1 // loop_header_branch
      %19 = sbr.rel (%p17) target = $region8
    $region5: #{tpu_custom_call.1} parent=1 // loop_body
      %s21 = ssub.s32 %s16, 1
      %s22 = ssub.s32 %s16, 2
      %s29 = sadd.s32 1, %s24
      %p30 = scmp.ge.s32.totalorder %s29, 1
      %s31 = scalar_select %p30, 0, %s29
      %s32 = sadd.s32 1, %s23
      %s33 = scalar_select %p30, %s32, %s23
      %p34 = scmp.ge.s32.totalorder %s33, 2
      %s35 = scalar_select %p34, 0, %s33
      %s36 = ssub.s32 %s24, %s31
      %p37 = scmp.eq.s32.totalorder %s36, 0
      %s39 = sadd.s32 %s38, 1
      %s40 = scalar_select %p37, %s38, %s39
      %p43 = pneg %p37
      %p44 = scmp.eq.s32.totalorder %s16, 1
      %p45 = por %p43, %p44
      %p46 = scmp.ne.s32.totalorder %s38, %s41
      %p47 = scmp.eq.s32.totalorder %s16, 0
      %p48 = por %p46, %p47
      %p49 = scmp.ne.s32.totalorder %s38, %s41
      %p50 = scmp.eq.s32.totalorder %s21, 1
      %p51 = por %p49, %p50
      %p52 = scmp.ne.s32.totalorder %s41, %s42
      %p53 = scmp.eq.s32.totalorder %s21, 0
      %p54 = por %p52, %p53
      %p55 = scmp.ne.s32.totalorder %s41, %s42
      %p56 = scmp.eq.s32.totalorder %s22, 1
      %p57 = por %p55, %p56
      %p59 = scmp.ne.s32.totalorder %s42, %s58
      %p60 = scmp.eq.s32.totalorder %s22, 0
      %p61 = por %p59, %p60
      %s63 = sadd.s32 %s62, 1
      %p66 = scmp.eq.s32.totalorder %s16, 1
      %p67 = scmp.ne.s32.totalorder %s62, %s64
      %p68 = scmp.eq.s32.totalorder %s16, 0
      %p69 = por %p67, %p68
      %p70 = scmp.ne.s32.totalorder %s62, %s64
      %p71 = scmp.eq.s32.totalorder %s21, 1
      %p72 = por %p70, %p71
      %p73 = scmp.ne.s32.totalorder %s64, %s65
      %p74 = scmp.eq.s32.totalorder %s21, 0
      %p75 = por %p73, %p74
      %p76 = scmp.ne.s32.totalorder %s64, %s65
      %p77 = scmp.eq.s32.totalorder %s22, 1
      %p78 = por %p76, %p77
      %p80 = scmp.ne.s32.totalorder %s65, %s79
      %p81 = scmp.eq.s32.totalorder %s22, 0
      %p82 = por %p80, %p81
      %s83 = ssub.s32 %s24, %s31
      %s84 = ssub.s32 %s23, %s35
      %s85 = sor.u32 %s83, %s84
      %p86 = scmp.eq.s32.totalorder %s85, 0
      %s88 = sadd.s32 %s87, 1
      %s89 = scalar_select %p86, %s87, %s88
      %p92 = pneg %p86
      %p93 = scmp.eq.s32.totalorder %s16, 1
      %p94 = por %p92, %p93
      %p95 = scmp.ne.s32.totalorder %s87, %s90
      %p96 = scmp.eq.s32.totalorder %s16, 0
      %p97 = por %p95, %p96
      %p98 = scmp.ne.s32.totalorder %s87, %s90
      %p99 = scmp.eq.s32.totalorder %s21, 1
      %p100 = por %p98, %p99
      %p101 = scmp.ne.s32.totalorder %s90, %s91
      %p102 = scmp.eq.s32.totalorder %s21, 0
      %p103 = por %p101, %p102
      %p104 = scmp.ne.s32.totalorder %s90, %s91
      %p105 = scmp.eq.s32.totalorder %s22, 1
      %p106 = por %p104, %p105
      %p108 = scmp.ne.s32.totalorder %s91, %s107
      %p109 = scmp.eq.s32.totalorder %s22, 0
      %p110 = por %p108, %p109
      %s111 = ssub.s32 %s23, %s35
      %p112 = scmp.eq.s32.totalorder %s111, 0
      %s114 = sadd.s32 %s113, 1
      %s115 = scalar_select %p112, %s113, %s114
      %p118 = pneg %p112
      %p119 = scmp.eq.s32.totalorder %s16, 1
      %p120 = por %p118, %p119
      %p121 = scmp.ne.s32.totalorder %s113, %s116
      %p122 = scmp.eq.s32.totalorder %s16, 0
      %p123 = por %p121, %p122
      %p124 = scmp.ne.s32.totalorder %s113, %s116
      %p125 = scmp.eq.s32.totalorder %s21, 1
      %p126 = por %p124, %p125
      %p127 = scmp.ne.s32.totalorder %s116, %s117
      %p128 = scmp.eq.s32.totalorder %s21, 0
      %p129 = por %p127, %p128
      %p130 = scmp.ne.s32.totalorder %s116, %s117
      %p131 = scmp.eq.s32.totalorder %s22, 1
      %p132 = por %p130, %p131
      %p134 = scmp.ne.s32.totalorder %s117, %s133
      %p135 = scmp.eq.s32.totalorder %s22, 0
      %p136 = por %p134, %p135
      %p137 = scmp.le.s32.totalorder 1, %s16
      %p138 = scmp.lt.s32.totalorder %s16, 3
      %p139 = pnand %p137, %p138
      %p140 = pneg %p139
      // Predicated region
      $region9: #{tpu_custom_call.1} parent=5 // pred_check
        _
      $region10: #{tpu_custom_call.1} parent=5 // pred_check_branch
        %142 = sbr.rel (%p139) target = $region12
      $region11: #{tpu_custom_call.1} parent=5 // pred_region
        %s143 = ssub.s32 %s16, 1
        // Predicated region
        $region13: #{tpu_custom_call.1} parent=11 // pred_check
          %p144 = pneg %p54
        $region14: #{tpu_custom_call.1} parent=11 // pred_check_branch
          %146 = sbr.rel (%p144) target = $region16
        $region15: #{tpu_custom_call.1} parent=11 // pred_region
          %s147 = smul.u32 2, %s26
          %149 = vsyncadd [#allocation4], 0
          %s150 = smul.addr %s147, 8
          %s151 = scalar_lea.hbm %s0, %s150
          %s152 = sshll.u32 %s151, 4
          %s153 = int_to_ptr.hbm [resolvable:$true] %s152
          %s154 = sshll.u32 [#allocation3], 4
          %s155 = int_to_ptr.vmem [resolvable:$true] %s154
          %160 = dma.hbm_to_vmem [thread:$0]  %s153, 512, %s155, [#allocation4], 256, 256, 16
        $region16: #{tpu_custom_call.1} parent=11 // pred_fallthru
          _
        // Predicated region
        $region17: #{tpu_custom_call.1} parent=11 // pred_check
          %p161 = pneg %p75
        $region18: #{tpu_custom_call.1} parent=11 // pred_check_branch
          %163 = sbr.rel (%p161) target = $region20
        $region19: #{tpu_custom_call.1} parent=11 // pred_region
          _
        $region20: #{tpu_custom_call.1} parent=11 // pred_fallthru
          _
      $region12: #{tpu_custom_call.1} parent=5 // pred_fallthru
        _
      %p164 = scmp.lt.s32.totalorder %s16, 2
      // Predicated region
      $region21: #{tpu_custom_call.1} parent=5 // pred_check
        %p165 = pneg %p164
      $region22: #{tpu_custom_call.1} parent=5 // pred_check_branch
        %167 = sbr.rel (%p165) target = $region24
      $region23: #{tpu_custom_call.1} parent=5 // pred_region
        // Predicated region
        $region25: #{tpu_custom_call.1} parent=23 // pred_check
          %p168 = pneg %p97
        $region26: #{tpu_custom_call.1} parent=23 // pred_check_branch
          %170 = sbr.rel (%p168) target = $region28
        $region27: #{tpu_custom_call.1} parent=23 // pred_region
          %s171 = sand.u32 %s87, 1
          %s172 = scalar_lea.sflag [#allocation7], %s171
          %s173 = sand.u32 %s87, 1
          %s174 = smul.addr %s173, 432
          %s175 = scalar_lea.vmem [#allocation6], %s174
          %s176 = smul.u32 27, %s24
          %s177 = smul.u32 2, %s23
          %179 = vsyncadd %s172, 0
          %s180 = smul.addr %s176, 4
          %s181 = sadd.s32 %s177, %s180
          %s182 = smul.addr %s181, 8
          %s183 = scalar_lea.hbm %s2, %s182
          %s184 = sshll.u32 %s183, 4
          %s185 = int_to_ptr.hbm [resolvable:$true] %s184
          %s186 = sshll.u32 %s175, 4
          %s187 = int_to_ptr.vmem [resolvable:$true] %s186
          %192 = dma.hbm_to_vmem [thread:$0]  %s185, 6912, %s187, %s172, 512, 256, 16
        $region28: #{tpu_custom_call.1} parent=23 // pred_fallthru
          _
      $region24: #{tpu_custom_call.1} parent=5 // pred_fallthru
        _
      %p193 = scmp.le.s32.totalorder 1, %s16
      %p194 = scmp.lt.s32.totalorder %s16, 3
      %p195 = pnand %p193, %p194
      %p196 = pneg %p195
      // Predicated region
      $region29: #{tpu_custom_call.1} parent=5 // pred_check
        _
      $region30: #{tpu_custom_call.1} parent=5 // pred_check_branch
        %198 = sbr.rel (%p195) target = $region32
      $region31: #{tpu_custom_call.1} parent=5 // pred_region
        %s199 = ssub.s32 %s16, 1
        // Predicated region
        $region33: #{tpu_custom_call.1} parent=31 // pred_check
          %p200 = pneg %p54
        $region34: #{tpu_custom_call.1} parent=31 // pred_check_branch
          %202 = sbr.rel (%p200) target = $region36
        $region35: #{tpu_custom_call.1} parent=31 // pred_region
          %204 = dma.done [#allocation4], 512
        $region36: #{tpu_custom_call.1} parent=31 // pred_fallthru
          _
        %s205 = sand.u32 %s90, 1
        %s206 = scalar_lea.sflag [#allocation7], %s205
        %s207 = sand.u32 %s90, 1
        %s208 = smul.addr %s207, 432
        %s209 = scalar_lea.vmem [#allocation6], %s208
        // Predicated region
        $region37: #{tpu_custom_call.1} parent=31 // pred_check
          %p210 = pneg %p103
        $region38: #{tpu_custom_call.1} parent=31 // pred_check_branch
          %212 = sbr.rel (%p210) target = $region40
        $region39: #{tpu_custom_call.1} parent=31 // pred_region
          %214 = dma.done %s206, 6912
        $region40: #{tpu_custom_call.1} parent=31 // pred_fallthru
          _
        %p215 = pneg %p54
        %p216 = pneg %p51
        %p217 = pneg %p75
        %p218 = pneg %p72
        %s219 = sand.u32 %s90, 1
        %s220 = scalar_lea.sflag [#allocation7], %s219
        %s221 = sand.u32 %s90, 1
        %s222 = smul.addr %s221, 432
        %s223 = scalar_lea.vmem [#allocation6], %s222
        %p224 = pneg %p103
        %p225 = pneg %p100
        %p226 = pneg %p129
        %p227 = pneg %p126
        %s228 = sand.u32 %s116, 1
        %s229 = scalar_lea.sflag [#allocation5], %s228
        %s230 = sand.u32 %s116, 1
        %s231 = smul.addr %s230, 32
        %s232 = scalar_lea.vmem [#allocation8], %s231
        %s233 = smul.u32 2, %s26
        %s234 = smul.u32 27, %s26
        %s235 = smul.u32 2, %s25
        %s236 = smul.u32 2, %s25
        %p237 = scmp.eq.s32.totalorder %s26, 0
        // Predicated region
        $region41: #{tpu_custom_call.1} parent=31 // pred_check
          %p238 = pneg %p237
        $region42: #{tpu_custom_call.1} parent=31 // pred_check_branch
          %240 = sbr.rel (%p238) target = $region44
        $region43: #{tpu_custom_call.1} parent=31 // pred_region
          %241 = vst [vmem:[#allocation2] sm:$0xff] 0.0
          %242 = vst [vmem:[#allocation2 + $0x8] sm:$0xff] 0.0
          %243 = vst [vmem:[#allocation2 + $0x10] sm:$0xff] 0.0
          %244 = vst [vmem:[#allocation2 + $0x18] sm:$0xff] 0.0
        $region44: #{tpu_custom_call.1} parent=31 // pred_fallthru
          _
        %v245 = vld [vmem:[#allocation2] sm:$0xff]
        %v246 = vld [vmem:[#allocation2 + $0x8] sm:$0xff]
        %v247 = vld [vmem:[#allocation2 + $0x10] sm:$0xff]
        %v248 = vld [vmem:[#allocation2 + $0x18] sm:$0xff]
        %v249 = vld [vmem:[#allocation3] sm:$0xff]
        %v250 = vld [vmem:[#allocation3 + $0x8] sm:$0xff]
        %v251 = vld [vmem:[#allocation3 + $0x10] sm:$0xff]
        %v252 = vld [vmem:[#allocation3 + $0x18] sm:$0xff]
        %v253 = vld [vmem:[%s209] sm:$0xff]
        %v254 = vld [vmem:[%s209 + $0x8] sm:$0xff]
        %v255 = vld [vmem:[%s209 + $0x10] sm:$0xff]
        %v256 = vld [vmem:[%s209 + $0x18] sm:$0xff]
        %v257 = vld [vmem:[%s209 + $0x20] sm:$0xff]
        %v258 = vld [vmem:[%s209 + $0x28] sm:$0xff]
        %v259 = vld [vmem:[%s209 + $0x30] sm:$0xff]
        %v260 = vld [vmem:[%s209 + $0x38] sm:$0xff]
        %v261 = vld [vmem:[%s209 + $0x40] sm:$0xff]
        %v262 = vld [vmem:[%s209 + $0x48] sm:$0xff]
        %v263 = vld [vmem:[%s209 + $0x50] sm:$0xff]
        %v264 = vld [vmem:[%s209 + $0x58] sm:$0xff]
        %v265 = vld [vmem:[%s209 + $0x60] sm:$0xff]
        %v266 = vld [vmem:[%s209 + $0x68] sm:$0xff]
        %v267 = vld [vmem:[%s209 + $0x70] sm:$0xff]
        %v268 = vld [vmem:[%s209 + $0x78] sm:$0xff]
        %v269 = vld [vmem:[%s209 + $0x80] sm:$0xff]
        %v270 = vld [vmem:[%s209 + $0x88] sm:$0xff]
        %v271 = vld [vmem:[%s209 + $0x90] sm:$0xff]
        %v272 = vld [vmem:[%s209 + $0x98] sm:$0xff]
        %v273 = vld [vmem:[%s209 + $0xa0] sm:$0xff]
        %v274 = vld [vmem:[%s209 + $0xa8] sm:$0xff]
        %v275 = vld [vmem:[%s209 + $0xb0] sm:$0xff]
        %v276 = vld [vmem:[%s209 + $0xb8] sm:$0xff]
        %v277 = vld [vmem:[%s209 + $0xc0] sm:$0xff]
        %v278 = vld [vmem:[%s209 + $0xc8] sm:$0xff]
        %v279 = vld [vmem:[%s209 + $0xd0] sm:$0xff]
        %v280 = vld [vmem:[%s209 + $0xd8] sm:$0xff]
        %v281 = vld [vmem:[%s209 + $0xe0] sm:$0xff]
        %v282 = vld [vmem:[%s209 + $0xe8] sm:$0xff]
        %v283 = vld [vmem:[%s209 + $0xf0] sm:$0xff]
        %v284 = vld [vmem:[%s209 + $0xf8] sm:$0xff]
        %v285 = vld [vmem:[%s209 + $0x100] sm:$0xff]
        %v286 = vld [vmem:[%s209 + $0x108] sm:$0xff]
        %v287 = vld [vmem:[%s209 + $0x110] sm:$0xff]
        %v288 = vld [vmem:[%s209 + $0x118] sm:$0xff]
        %v289 = vld [vmem:[%s209 + $0x120] sm:$0xff]
        %v290 = vld [vmem:[%s209 + $0x128] sm:$0xff]
        %v291 = vld [vmem:[%s209 + $0x130] sm:$0xff]
        %v292 = vld [vmem:[%s209 + $0x138] sm:$0xff]
        %v293 = vld [vmem:[%s209 + $0x140] sm:$0xff]
        %v294 = vld [vmem:[%s209 + $0x148] sm:$0xff]
        %v295 = vld [vmem:[%s209 + $0x150] sm:$0xff]
        %v296 = vld [vmem:[%s209 + $0x158] sm:$0xff]
        %v297 = vld [vmem:[%s209 + $0x160] sm:$0xff]
        %v298 = vld [vmem:[%s209 + $0x168] sm:$0xff]
        %v299 = vld [vmem:[%s209 + $0x170] sm:$0xff]
        %v300 = vld [vmem:[%s209 + $0x178] sm:$0xff]
        %v301 = vld [vmem:[%s209 + $0x180] sm:$0xff]
        %v302 = vld [vmem:[%s209 + $0x188] sm:$0xff]
        %v303 = vld [vmem:[%s209 + $0x190] sm:$0xff]
        %v304 = vld [vmem:[%s209 + $0x198] sm:$0xff]
        %v305 = vld [vmem:[%s209 + $0x1a0] sm:$0xff]
        %v306 = vld [vmem:[%s209 + $0x1a8] sm:$0xff]
        %vm307 = vcmask 719872
        %v309 = vsel %vm307, %v250, 0
        %v312 = vsel %vm307, %v252, 0
        %314 = vmatpush.msra.mxu0 %v283
        %315 = vmatpush.msra.mxu0 %v281
        %316 = vmatpush.msra.mxu0 %v279
        %317 = vmatpush.msra.mxu0 %v277
        %318 = vmatpush.msra.mxu0 %v275
        %319 = vmatpush.msra.mxu0 %v273
        %320 = vmatpush.msra.mxu0 %v271
        %321 = vmatpush.msra.mxu0 %v269
        %322 = vmatpush.msra.mxu0 %v267
        %323 = vmatpush.msra.mxu0 %v265
        %324 = vmatpush.msra.mxu0 %v263
        %325 = vmatpush.msra.mxu0 %v261
        %326 = vmatpush.msra.mxu0 %v259
        %327 = vmatpush.msra.mxu0 %v257
        %328 = vmatpush.msra.mxu0 %v255
        %329 = vmatpush.msra.mxu0 %v253
        %330 = vmatmul.f32.gmra.mxu0 %v249
        %v331 = vpop.f32.mrf.mxu0
        %v332 = vadd.f32 0.0, %v331
        %333 = vmatmul.f32.gmra.mxu0 %v251
        %v334 = vpop.f32.mrf.mxu0
        %v335 = vadd.f32 0.0, %v334
        %336 = vdwg.mxu0
        %337 = vmatpush.msra.mxu0 0.0
        %338 = vmatpush.msra.mxu0 0.0
        %339 = vmatpush.msra.mxu0 0.0
        %340 = vmatpush.msra.mxu0 0.0
        %341 = vmatpush.msra.mxu0 0.0
        %342 = vmatpush.msra.mxu0 %v305
        %343 = vmatpush.msra.mxu0 %v303
        %344 = vmatpush.msra.mxu0 %v301
        %345 = vmatpush.msra.mxu0 %v299
        %346 = vmatpush.msra.mxu0 %v297
        %347 = vmatpush.msra.mxu0 %v295
        %348 = vmatpush.msra.mxu0 %v293
        %349 = vmatpush.msra.mxu0 %v291
        %350 = vmatpush.msra.mxu0 %v289
        %351 = vmatpush.msra.mxu0 %v287
        %352 = vmatpush.msra.mxu0 %v285
        %353 = vmatmul.f32.gmra.mxu0 %v309
        %v354 = vpop.f32.mrf.mxu0
        %v355 = vadd.f32 %v332, %v354
        %356 = vmatmul.f32.gmra.mxu0 %v312
        %v357 = vpop.f32.mrf.mxu0
        %v358 = vadd.f32 %v335, %v357
        %359 = vdwg.mxu0
        %360 = vmatpush.msra.mxu0 %v284
        %361 = vmatpush.msra.mxu0 %v282
        %362 = vmatpush.msra.mxu0 %v280
        %363 = vmatpush.msra.mxu0 %v278
        %364 = vmatpush.msra.mxu0 %v276
        %365 = vmatpush.msra.mxu0 %v274
        %366 = vmatpush.msra.mxu0 %v272
        %367 = vmatpush.msra.mxu0 %v270
        %368 = vmatpush.msra.mxu0 %v268
        %369 = vmatpush.msra.mxu0 %v266
        %370 = vmatpush.msra.mxu0 %v264
        %371 = vmatpush.msra.mxu0 %v262
        %372 = vmatpush.msra.mxu0 %v260
        %373 = vmatpush.msra.mxu0 %v258
        %374 = vmatpush.msra.mxu0 %v256
        %375 = vmatpush.msra.mxu0 %v254
        %376 = vmatmul.f32.gmra.mxu0 %v249
        %v377 = vpop.f32.mrf.mxu0
        %v378 = vadd.f32 0.0, %v377
        %379 = vmatmul.f32.gmra.mxu0 %v251
        %v380 = vpop.f32.mrf.mxu0
        %v381 = vadd.f32 0.0, %v380
        %382 = vdwg.mxu0
        %383 = vmatpush.msra.mxu0 0.0
        %384 = vmatpush.msra.mxu0 0.0
        %385 = vmatpush.msra.mxu0 0.0
        %386 = vmatpush.msra.mxu0 0.0
        %387 = vmatpush.msra.mxu0 0.0
        %388 = vmatpush.msra.mxu0 %v306
        %389 = vmatpush.msra.mxu0 %v304
        %390 = vmatpush.msra.mxu0 %v302
        %391 = vmatpush.msra.mxu0 %v300
        %392 = vmatpush.msra.mxu0 %v298
        %393 = vmatpush.msra.mxu0 %v296
        %394 = vmatpush.msra.mxu0 %v294
        %395 = vmatpush.msra.mxu0 %v292
        %396 = vmatpush.msra.mxu0 %v290
        %397 = vmatpush.msra.mxu0 %v288
        %398 = vmatpush.msra.mxu0 %v286
        %399 = vmatmul.f32.gmra.mxu0 %v309
        %v400 = vpop.f32.mrf.mxu0
        %v401 = vadd.f32 %v378, %v400
        %402 = vmatmul.f32.gmra.mxu0 %v312
        %v403 = vpop.f32.mrf.mxu0
        %v404 = vadd.f32 %v381, %v403
        %405 = vdwg.mxu0
        %v406 = vadd.f32 %v245, %v355
        %v407 = vadd.f32 %v246, %v401
        %v408 = vadd.f32 %v247, %v358
        %v409 = vadd.f32 %v248, %v404
        %410 = vst [vmem:[#allocation2] sm:$0xff] %v406
        %411 = vst [vmem:[#allocation2 + $0x8] sm:$0xff] %v407
        %412 = vst [vmem:[#allocation2 + $0x10] sm:$0xff] %v408
        %413 = vst [vmem:[#allocation2 + $0x18] sm:$0xff] %v409
        // Predicated region
        $region45: #{tpu_custom_call.1} parent=31 // pred_check
          %p414 = pneg %p237
        $region46: #{tpu_custom_call.1} parent=31 // pred_check_branch
          %416 = sbr.rel (%p414) target = $region48
        $region47: #{tpu_custom_call.1} parent=31 // pred_region
          %v417 = vld [vmem:[#allocation2] sm:$0xff]
          %v418 = vld [vmem:[#allocation2 + $0x8] sm:$0xff]
          %v419 = vld [vmem:[#allocation2 + $0x10] sm:$0xff]
          %v420 = vld [vmem:[#allocation2 + $0x18] sm:$0xff]
          %v421 = vld [vmem:[%s1] sm:$0xff]
          %v422 = vld [vmem:[%s1 + $0x8] sm:$0xff]
          %424 = vset.pattern.permute.xlu0 0
          %425 = vperm.xlu0 %424, %v421
          %v426 = vpop.permute.xlu0 %425
          %429 = vset.pattern.permute.xlu0 0
          %430 = vperm.xlu0 %429, %v422
          %v431 = vpop.permute.xlu0 %430
          %v433 = vadd.f32 %v417, %v426
          %v434 = vadd.f32 %v418, %v426
          %v435 = vadd.f32 %v419, %v431
          %v436 = vadd.f32 %v420, %v431
          %437 = vst [vmem:[%s232] sm:$0xff] %v433
          %438 = vst [vmem:[%s232 + $0x8] sm:$0xff] %v434
          %439 = vst [vmem:[%s232 + $0x10] sm:$0xff] %v435
          %440 = vst [vmem:[%s232 + $0x18] sm:$0xff] %v436
        $region48: #{tpu_custom_call.1} parent=31 // pred_fallthru
          _
        %s441 = sand.u32 %s116, 1
        %s442 = scalar_lea.sflag [#allocation5], %s441
        %s443 = sand.u32 %s116, 1
        %s444 = smul.addr %s443, 32
        %s445 = scalar_lea.vmem [#allocation8], %s444
        // Predicated region
        $region49: #{tpu_custom_call.1} parent=31 // pred_check
          %p446 = pneg %p126
        $region50: #{tpu_custom_call.1} parent=31 // pred_check_branch
          %448 = sbr.rel (%p446) target = $region52
        $region51: #{tpu_custom_call.1} parent=31 // pred_region
          %s449 = smul.u32 2, %s25
          %451 = vsyncadd %s442, 0
          %s452 = smul.addr %s449, 8
          %s453 = scalar_lea.hbm %s3, %s452
          %s454 = sshll.u32 %s445, 4
          %s455 = int_to_ptr.vmem [resolvable:$true] %s454
          %s456 = sshll.u32 %s453, 4
          %s457 = int_to_ptr.hbm [resolvable:$true] %s456
          %462 = dma.vmem_to_hbm [thread:$0]  %s455, 512, %s457, %s442, 256, 512, 16
        $region52: #{tpu_custom_call.1} parent=31 // pred_fallthru
          _
      $region32: #{tpu_custom_call.1} parent=5 // pred_fallthru
        _
      %p463 = scmp.le.s32.totalorder 2, %s16
      // Predicated region
      $region53: #{tpu_custom_call.1} parent=5 // pred_check
        %p464 = pneg %p463
      $region54: #{tpu_custom_call.1} parent=5 // pred_check_branch
        %466 = sbr.rel (%p464) target = $region56
      $region55: #{tpu_custom_call.1} parent=5 // pred_region
        %s467 = ssub.s32 %s16, 2
        // Predicated region
        $region57: #{tpu_custom_call.1} parent=55 // pred_check
          %p468 = pneg %p132
        $region58: #{tpu_custom_call.1} parent=55 // pred_check_branch
          %470 = sbr.rel (%p468) target = $region60
        $region59: #{tpu_custom_call.1} parent=55 // pred_region
          %s471 = sand.u32 %s117, 1
          %s472 = scalar_lea.sflag [#allocation5], %s471
          %s473 = sand.u32 %s117, 1
          %s474 = smul.addr %s473, 32
          %s475 = scalar_lea.vmem [#allocation8], %s474
          %477 = dma.done %s472, 512
        $region60: #{tpu_custom_call.1} parent=55 // pred_fallthru
          _
      $region56: #{tpu_custom_call.1} parent=5 // pred_fallthru
        _
    $region6: #{tpu_custom_call.1} parent=1 // loop_footer
      %s20 = sadd.s32 1, %s16
    $region7: #{tpu_custom_call.1} parent=1 // loop_footer_branch
      %15 = sbr.rel target = $region3
    $region8: #{tpu_custom_call.1} parent=1 // loop_exit
      _
    %478 = vsyncpa [#allocation4], 1
    %s479 = scalar_lea.sflag [#allocation4], 1
    %480 = vsyncpa %s479, 1
    %481 = vsyncpa [#allocation7], 1
    %s482 = scalar_lea.sflag [#allocation7], 1
    %483 = vsyncpa %s482, 1
    %484 = vsyncpa [#allocation5], 1
    %s485 = scalar_lea.sflag [#allocation5], 1
    %486 = vsyncpa %s485, 1

</llo_original>
